<compile_context>
chip_gen: v5e
topology: v5e:2x2
jax: 0.10.0
libtpu: 0.0.40
codegen_flags: <defaults>
</compile_context>

<pallas_src>
import functools

import jax
import jax.numpy as jnp
from jax.experimental import pallas as pl
from jax.experimental.pallas import tpu as pltpu


_TILE_BYTES = 8 * 1024 * 1024          # target input-block bytes per operand
_SLAB_ELEMS = 256 * 1024               # rows-slab per inner step (~1 MiB f32 temps)
_VMEM_LIMIT_BYTES = 48 * 1024 * 1024   # 2 ops x 2 buffers x 8 MiB + temps; < v7x 64 MiB/TC


def _round_up(x: int, m: int) -> int:
    return ((x + m - 1) // m) * m


def _round_down(x: int, m: int) -> int:
    return (x // m) * m


def _pick_layout(shape, itemsize):
    """Choose a copy-free 2D view (rows, cols) of the flattened operands."""
    *batch_dims, n, m = shape
    num_matrices = 1
    for d in batch_dims:
        num_matrices *= d
    num_matrices = max(num_matrices, 1)
    total = num_matrices * n * m

    # Lane-dense layout whenever possible (cols a multiple of 128, free reshape).
    for c in (512, 256, 128):
        if total % c == 0:
            return total // c, c, num_matrices

    # Ragged element count: keep a trailing-dim factorization (still a free
    # row-major reshape).  Lanes are padded to 128 inside VMEM by the compiler;
    # no HBM padding/copies ever happen.
    per_mat = n * m
    if per_mat * itemsize <= (1 << 20):
        return num_matrices, per_mat, num_matrices
    return num_matrices * n, m, num_matrices


def _make_partial_sum_kernel(rows, cols, tile_rows, slab, needs_mask):
    """One (tile_rows, cols) input block per grid step -> one f32 partial sum."""
    n_full = tile_rows // slab
    rem = tile_rows - n_full * slab

    def _masked_sq_diff(x, t, row0, valid):
        # In-register upcast: HBM traffic stays at the narrow input dtype
        # (mandatory on v5e, which has no bf16 VALUs).
        d = x.astype(jnp.float32) - t.astype(jnp.float32)
        if needs_mask:
            ridx = row0 + jax.lax.broadcasted_iota(jnp.int32, d.shape, 0)
            d = jnp.where(ridx < valid, d, 0.0)
        return d * d

    def kernel(x_ref, t_ref, o_ref, acc_ref):
        # Rows of this tile holding real data (>= tile_rows except on the last,
        # possibly partial, tile).
        valid = rows - pl.program_id(0) * tile_rows

        if n_full == 1 and rem == 0:
            # Tile fits in a single slab: straight-line, no scratch round-trip.
            total = jnp.sum(_masked_sq_diff(x_ref[...], t_ref[...], 0, valid))
        else:
            acc_ref[...] = jnp.zeros_like(acc_ref)

            @pl.loop(0, n_full)
            def _(s):
                r0 = pl.multiple_of(s * slab, slab)
                acc_ref[...] += _masked_sq_diff(x_ref[pl.ds(r0, slab), :],
                                                t_ref[pl.ds(r0, slab), :],
                                                r0, valid)

            total = jnp.sum(acc_ref[...])
            if rem > 0:
                r0 = n_full * slab
                total = total + jnp.sum(
                    _masked_sq_diff(x_ref[pl.ds(r0, rem), :],
                                    t_ref[pl.ds(r0, rem), :], r0, valid))

        o_ref[0, 0] = total

    return kernel


@functools.partial(jax.jit, static_argnames=("norm",))
def matrix_mse_loss(input_data: jax.Array, target: jax.Array,
                    norm: str = "fro") -> jax.Array:
    """Pallas implementation of MatrixMSELoss.forward (Frobenius norm)."""
    if norm != "fro":
        # TODO(synk): only the Frobenius hot path is implemented; spectral /
        # nuclear matrix norms need an SVD which has no Pallas equivalent.
        raise NotImplementedError("Only norm='fro' is supported in the Pallas kernel.")

    assert input_data.shape == target.shape, "input/target shape mismatch"
    assert input_data.ndim >= 2, "matrix_norm requires at least 2 dims"

    itemsize = jnp.dtype(input_data.dtype).itemsize
    rows, cols, num_matrices = _pick_layout(input_data.shape, itemsize)
    total = rows * cols  # exact element count: no padding anywhere

    # Free under jit (row-major bitcast) -- replaces the old jnp.pad + reshape
    # that used to copy both operands through HBM.
    x = input_data.reshape(rows, cols)
    t = target.reshape(rows, cols)

    # dtype-aware tiling: native sublane multiple and ~8 MiB blocks per operand.
    sub = {4: 8, 2: 16, 1: 32}.get(itemsize, 8)
    padded_cols = _round_up(cols, 128)
    slab = max(sub, _round_down(_SLAB_ELEMS // padded_cols, sub))
    cap = max(slab, _round_down((_TILE_BYTES // itemsize) // padded_cols, slab))

    if rows <= cap:
        half = pl.cdiv(rows, 2)
        if half >= slab:
            tile_rows = _round_up(half, slab)   # 2 steps -> both v7x cores busy
        elif rows >= 2 * sub:
            tile_rows = _round_up(half, sub)    # still 2 (small) steps
        else:
            tile_rows = rows                    # tiny input: one full-extent tile
    else:
        tile_rows = cap
    num_tiles = pl.cdiv(rows, tile_rows)
    if num_tiles > 2 and num_tiles % 2 == 1:
        # Prefer an even tile count so the two v7x TensorCores stay balanced.
        tile_rows = max(sub, _round_up(pl.cdiv(rows, num_tiles + 1), sub))
        num_tiles = pl.cdiv(rows, tile_rows)
    needs_mask = (rows % tile_rows) != 0        # only the last tile is partial
    slab = min(slab, tile_rows)

    kernel = _make_partial_sum_kernel(rows, cols, tile_rows, slab, needs_mask)

    cost = pl.CostEstimate(
        flops=3 * total,                                   # sub + mul + add per element
        transcendentals=0,
        bytes_accessed=2 * total * itemsize + num_tiles * 4,
    )

    partials = pl.pallas_call(
        kernel,
        out_shape=jax.ShapeDtypeStruct((num_tiles, 1), jnp.float32),
        grid_spec=pltpu.PrefetchScalarGridSpec(
            num_scalar_prefetch=0,
            grid=(num_tiles,),
            in_specs=[
                pl.BlockSpec((tile_rows, cols), lambda i: (i, 0)),
                pl.BlockSpec((tile_rows, cols), lambda i: (i, 0)),
            ],
            out_specs=pl.BlockSpec((1, 1), lambda i: (i, 0),
                                   memory_space=pltpu.SMEM),
            scratch_shapes=[pltpu.VMEM((slab, cols), jnp.float32)],
        ),
        compiler_params=pltpu.CompilerParams(
            dimension_semantics=("parallel",),   # independent partials -> megacore
            vmem_limit_bytes=_VMEM_LIMIT_BYTES,
        ),
        cost_estimate=cost,
    )(x, t)

    # Tiny final reduction of per-tile f32 partials + mean over the true batch.
    return jnp.sum(partials) / jnp.float32(num_matrices)


def _reference(input_data, target):
    d = input_data.astype(jnp.float32) - target.astype(jnp.float32)
    per_matrix = jnp.sum(d * d, axis=(-2, -1))
    return jnp.mean(per_matrix)


if __name__ == "__main__":
    key = jax.random.PRNGKey(0)

    checks = [
        (2, 4, 16, 16),   # canonical small batch of 16x16 matrices (single tile)
        (40, 16, 32),     # multi-tile path with a masked partial last tile
        (3, 4, 5, 7),     # ragged element count (not a multiple of 128 lanes)
    ]
    for idx, shape in enumerate(checks):
        k1, k2 = jax.random.split(jax.random.fold_in(key, idx))
        x = jax.random.normal(k1, shape, dtype=jnp.float32)
        y = jax.random.normal(k2, shape, dtype=jnp.float32)

        loss = jax.block_until_ready(matrix_mse_loss(x, y, norm="fro"))
        ref = _reference(x, y)
        assert jnp.allclose(loss, ref, rtol=1e-5, atol=1e-5), (shape, loss, ref)

    print("KERNEL_OK")
</pallas_src>

<mosaic_0001>
module attributes {stable_mosaic.version = 11 : i64} {
  func.func @kernel(%arg0: i32, %arg1: memref<4x512xf32, #tpu.memory_space<vmem>>, %arg2: memref<4x512xf32, #tpu.memory_space<vmem>>, %arg3: memref<1x1xf32, #tpu.memory_space<smem>>, %arg4: memref<4x512xf32, #tpu.memory_space<vmem>>) attributes {dimension_semantics = [#tpu.dimension_semantics<parallel>], iteration_bounds = array<i64: 1>, scalar_prefetch = 0 : i64, scratch_operands = 1 : i64, tpu.core_type = #tpu.core_type<tc>, window_params = [{transform_indices = @transform_0, window_bounds = array<i64: 4, 512>}, {transform_indices = @transform_1, window_bounds = array<i64: 4, 512>}, {transform_indices = @transform_2, window_bounds = array<i64: 1, 1>}]} {
    %c0 = arith.constant 0 : index
    %c0_0 = arith.constant 0 : index
    %0 = vector.load %arg1[%c0, %c0_0] : memref<4x512xf32, #tpu.memory_space<vmem>>, vector<4x512xf32>
    %c0_1 = arith.constant 0 : index
    %c0_2 = arith.constant 0 : index
    %1 = vector.load %arg2[%c0_1, %c0_2] : memref<4x512xf32, #tpu.memory_space<vmem>>, vector<4x512xf32>
    %2 = arith.subf %0, %1 : vector<4x512xf32>
    %3 = arith.mulf %2, %2 : vector<4x512xf32>
    %4 = vector.shape_cast %3 : vector<4x512xf32> to vector<1x4x512xf32>
    %cst = arith.constant dense<0.000000e+00> : vector<1xf32>
    %5 = vector.multi_reduction <add>, %4, %cst [1, 2] : vector<1x4x512xf32> to vector<1xf32>
    %6 = vector.shape_cast %5 : vector<1xf32> to vector<1x1x1xf32>
    %7 = vector.extract %6[0, 0, 0] : f32 from vector<1x1x1xf32>
    %c0_3 = arith.constant 0 : index
    %c0_4 = arith.constant 0 : index
    %8 = memref.load %arg3[%c0_3, %c0_4] : memref<1x1xf32, #tpu.memory_space<smem>>
    memref.store %7, %arg3[%c0_3, %c0_4] : memref<1x1xf32, #tpu.memory_space<smem>>
    return
  }
  func.func @transform_0(%arg0: i32) -> (i32, i32) {
    %c0_i32 = arith.constant 0 : i32
    %c0_i32_0 = arith.constant 0 : i32
    return %arg0, %c0_i32 : i32, i32
  }
  func.func @transform_1(%arg0: i32) -> (i32, i32) {
    %c0_i32 = arith.constant 0 : i32
    %c0_i32_0 = arith.constant 0 : i32
    return %arg0, %c0_i32 : i32, i32
  }
  func.func @transform_2(%arg0: i32) -> (i32, i32) {
    %c0_i32 = arith.constant 0 : i32
    %c0_i32_0 = arith.constant 0 : i32
    return %arg0, %c0_i32 : i32, i32
  }
}

</mosaic_0001>

<llo_original>
// kernel: matrix_mse_loss.1
$region0: #{matrix_mse_loss.1}
  #allocation0 [shape = 'u32[]', space=smem, size = 0x4, offset = 0x4, fixed_abs, tag = 'smem constant byte address 0x4 - core index']
  #allocation1 [shape = 'u32[72,128]{1,0:T(1,128)}', space=vmem, size = 0x9000, scoped, tag = 'internal scratch']
  #allocation2 [shape = 'f32[4,512]{1,0:T(4,128)}', space=vmem, size = 0x2000, scoped, tag = 'scratch operand']
  %s0 = inlined_call_operand.vmem [shape: f32[4,512], index: 0, kind: input, shape index: {}]
  %s1 = inlined_call_operand.vmem [shape: f32[4,512], index: 1, kind: input, shape index: {}]
  %s2 = inlined_call_operand.hbm [shape: f32[1,1], index: 2, kind: output, shape index: {}]
  %s3 = sld [smem:[#allocation0]]
  $region18: #{matrix_mse_loss.1} parent=0
    _
  %s5 = ssub.s32 1, %s3
  %s6 = scalar_select 0, %s5, %s3
  $region1: #{matrix_mse_loss.1} parent=0
    #allocation3 [shape = 'u8[512]{0}', space=smem, size = 0x200, scoped, tag = 'output window, operand 0, single buffered']
    #allocation4 [shape = 's32[1]{0}', space=sflag, size = 0x4, scoped, tag = 'scoped memory for matrix_mse_loss.1']
    %7 = vsyncpa [#allocation4], 0
    // Predicated region
    $region2: #{matrix_mse_loss.1} parent=1 // pred_check
      _
    $region3: #{matrix_mse_loss.1} parent=1 // pred_check_branch
      %9 = sbr.rel (0) target = $region5
    $region4: #{matrix_mse_loss.1} parent=1 // pred_region
      _
    $region5: #{matrix_mse_loss.1} parent=1 // pred_fallthru
      _
    // Predicated region
    $region6: #{matrix_mse_loss.1} parent=1 // pred_check
      _
    $region7: #{matrix_mse_loss.1} parent=1 // pred_check_branch
      %11 = sbr.rel (0) target = $region9
    $region8: #{matrix_mse_loss.1} parent=1 // pred_region
      _
    $region9: #{matrix_mse_loss.1} parent=1 // pred_fallthru
      _
    %v12 = vld [vmem:[%s0] sm:$0xff]
    %v13 = vld [vmem:[%s0 + $0x8] sm:$0xff]
    %v14 = vld [vmem:[%s1] sm:$0xff]
    %v15 = vld [vmem:[%s1 + $0x8] sm:$0xff]
    %v16 = vsub.f32 %v12, %v14
    %v17 = vsub.f32 %v13, %v15
    %v18 = vmul.f32 %v16, %v16
    %v19 = vmul.f32 %v17, %v17
    %22 = vst [vmem:[#allocation1] ss:$2 sm:$0xff] %v18
    %s23 = scalar_lea.vmem [#allocation1], 16
    %24 = vst [vmem:[%s23] ss:$2 sm:$0xff] %v19
    %v25 = vld.sshfl [vmem:[#allocation1] sm:$0xff pattern:$0x75316420]
    %v26 = vld.sshfl [vmem:[#allocation1 + $0x8] sm:$0xff pattern:$0x75316420]
    %v27 = vld.sshfl [vmem:[#allocation1 + $0x10] sm:$0xff pattern:$0x75316420]
    %v28 = vld.sshfl [vmem:[#allocation1 + $0x18] sm:$0xff pattern:$0x75316420]
    %vm33 = vcmask 1043456
    %v34 = vsel %vm33, %v25, 0.0
    %v35 = vsel %vm33, %v26, 0.0
    %v36 = vadd.f32 %v34, %v35
    %v37 = vsel %vm33, %v27, 0.0
    %v38 = vadd.f32 %v36, %v37
    %v39 = vsel %vm33, %v28, 0.0
    %v40 = vadd.f32 %v38, %v39
    %41 = vadd.xlane.f32.xlu0 %v40
    %v42 = vpop.xlane.xlu0 %41
    %v43 = vrot.slane %v42, 4
    %v44 = vadd.f32 %v42, %v43
    %v45 = vrot.slane %v44, 2
    %v46 = vadd.f32 %v44, %v45
    %v47 = vrot.slane %v46, 1
    %v48 = vadd.f32 %v46, %v47
    %s49 = vtos %v48
    %s50 = scalar_lea.smem [#allocation3], 0
    %51 = sst [smem:[%s50]] %s49
    // Predicated region
    $region10: #{matrix_mse_loss.1} parent=1 // pred_check
      _
    $region11: #{matrix_mse_loss.1} parent=1 // pred_check_branch
      %53 = sbr.rel (0) target = $region13
    $region12: #{matrix_mse_loss.1} parent=1 // pred_region
      %55 = vsyncadd [#allocation4], 0
      %s57 = sshll.u32 %s2, 4
      %s58 = int_to_ptr.hbm [resolvable:$true] %s57
      %60 = dma.smem_to_hbm [#allocation3], 16, %s58, [#allocation4]
    $region13: #{matrix_mse_loss.1} parent=1 // pred_fallthru
      _
    // Predicated region
    $region14: #{matrix_mse_loss.1} parent=1 // pred_check
      _
    $region15: #{matrix_mse_loss.1} parent=1 // pred_check_branch
      %62 = sbr.rel (0) target = $region17
    $region16: #{matrix_mse_loss.1} parent=1 // pred_region
      %64 = dma.done [#allocation4], 16
    $region17: #{matrix_mse_loss.1} parent=1 // pred_fallthru
      _
    %65 = sfence
    %66 = vsyncpa [#allocation4], 1

</llo_original>
